<compile_context>
chip_gen: v7x
topology: tpu7x:2x2x1
jax: 0.10.0
libtpu: 0.0.40
codegen_flags: <defaults>
</compile_context>

<pallas_src>
import jax
import jax.numpy as jnp
from jax import lax
from jax.experimental import pallas as pl
from jax.experimental.pallas import tpu as pltpu

_TM_CAP = 512          # max rows per M tile (multiple of 8)
_TK_MAX = 4096         # hard cap on the K tile


def _round_up(x, m):
    return ((x + m - 1) // m) * m


def _vmem_budget_bytes():
    """Generation-aware VMEM budget (v5e/v6e: 128 MiB phys, v7x: 64 MiB/TC)."""
    try:
        cap = getattr(pltpu.get_tpu_info(), "vmem_capacity_bytes", None)
    except Exception:
        cap = None
    if not cap:
        cap = 64 * 1024 * 1024            # conservative fallback (v7x per-TC)
    return int(min(cap // 2, 48 * 1024 * 1024))


def _choose_tk(nf_pad, tk_cap):
    """Pick the K tile.  Prefer the largest multiple-of-128 divisor of nf_pad
    (so the activation never needs a K-pad copy); only pad K up to a bigger
    tile when all divisors are tiny and the extra padding is cheap."""
    hi = min(tk_cap, nf_pad)
    best = 128
    for t in range(hi, 127, -128):
        if nf_pad % t == 0:
            best = t
            break
    if best * 4 >= hi:                     # divisor is within 4x of the cap
        return best, nf_pad
    for t in range(hi, best, -128):        # pad K up only if the pad is small
        padded = _round_up(nf_pad, t)
        if padded - nf_pad <= max(128, nf_pad // 8):
            return t, padded
    return best, nf_pad


def _plan(nf, out_dim):
    """Tiling plan from (nf, out_dim) only, so weights can be prepped once."""
    budget = _vmem_budget_bytes()
    out_pad = _round_up(out_dim, 128)      # lane-dense output stores
    tn = 128
    for cand in (512, 384, 256, 128):
        if cand <= out_pad and out_pad % cand == 0:
            tn = cand
            break
    nf_pad = _round_up(nf, 128)

    # Per-step VMEM: double-buffered x/w/bias blocks + double-buffered out
    # block + f32 accumulator, sized with the worst-case M tile (_TM_CAP).
    def step_bytes(tk):
        return 4 * (2 * _TM_CAP * tk + 2 * tk * tn + 2 * tn
                    + 2 * _TM_CAP * tn + _TM_CAP * tn)

    tk_cap = 128
    t = 256
    while t <= min(_TK_MAX, nf_pad) and step_bytes(t) <= int(0.7 * budget):
        tk_cap = t
        t += 128
    tk, nf_pad = _choose_tk(nf_pad, tk_cap)
    return dict(nf=nf, out_dim=out_dim, nf_pad=nf_pad, out_pad=out_pad,
                tk=tk, tn=tn, budget=budget)


# ----------------------------------------------------------------------------
# Kernels
# ----------------------------------------------------------------------------
def _flatten_head_kernel_acc(x_ref, w_ref, b_ref, o_ref, acc_ref):
    # x:(tm,tk)  w:(tk,tn)  b:(1,tn)  o:(tm,tn)  acc:(tm,tn) f32
    k = pl.program_id(2)

    @pl.when(k == 0)
    def _():
        acc_ref[...] = jnp.zeros_like(acc_ref)

    acc_ref[...] += jnp.dot(x_ref[...].astype(w_ref.dtype), w_ref[...],
                            preferred_element_type=jnp.float32)

    @pl.when(k == pl.num_programs(2) - 1)
    def _():
        o_ref[...] = (acc_ref[...] + b_ref[...]).astype(o_ref.dtype)


def _flatten_head_kernel_single(x_ref, w_ref, b_ref, o_ref):
    # Whole K in one step: no accumulator scratch round trip.
    y = jnp.dot(x_ref[...].astype(w_ref.dtype), w_ref[...],
                preferred_element_type=jnp.float32)
    o_ref[...] = (y + b_ref[...]).astype(o_ref.dtype)


# ----------------------------------------------------------------------------
# Parameter prep (one-time) + forward (hot path)
# ----------------------------------------------------------------------------
def prepare_flatten_head(weight, bias, *, weight_dtype=None):
    """One-time parameter layout (call at setup, NOT per forward):
      * transpose the (out_dim, nf) PyTorch weight to (nf, out_dim),
      * zero-pad to the tiled (nf_pad, out_pad) shape,
      * optionally cast to bf16 (halves the dominant HBM traffic; accumulation
        stays f32 inside the kernel).
    """
    out_dim, nf = weight.shape
    plan = _plan(nf, out_dim)
    w_t = jnp.pad(weight.T, ((0, plan["nf_pad"] - nf),
                             (0, plan["out_pad"] - out_dim)))
    if weight_dtype is not None:
        w_t = w_t.astype(weight_dtype)
    b_p = jnp.pad(bias.astype(jnp.float32).reshape(1, out_dim),
                  ((0, 0), (0, plan["out_pad"] - out_dim)))
    return w_t, b_p, plan


def flatten_head_forward(x, w_t, b_p, plan, *, no_fc=False):
    """FlattenHead.forward with pre-laid-out parameters (hot path)."""
    *lead, d_model, patch_num = x.shape
    nf = d_model * patch_num
    assert nf == plan["nf"], (nf, plan["nf"])
    x_flat = x.reshape(*lead, nf)          # nn.Flatten(start_dim=-2)
    if no_fc:
        return x_flat

    M = 1
    for s in lead:
        M *= s
    x2d = x_flat.reshape(M, nf)

    nf_pad, out_pad = plan["nf_pad"], plan["out_pad"]
    out_dim, tk, tn = plan["out_dim"], plan["tk"], plan["tn"]

    # Single M tile whenever it fits: the weight is streamed from HBM once.
    if M <= _TM_CAP:
        tm, m_pad = M, M                   # block == full dim (no 8-align pad)
    else:
        tm = _TM_CAP
        m_pad = _round_up(M, tm)
    pad_m, pad_k = m_pad - M, nf_pad - nf
    if pad_m or pad_k:                     # usually a no-op (no activation copy)
        x2d = jnp.pad(x2d, ((0, pad_m), (0, pad_k)))

    grid_i, grid_j, grid_k = m_pad // tm, out_pad // tn, nf_pad // tk

    x_bytes = x.dtype.itemsize
    w_bytes = w_t.dtype.itemsize
    cost = pl.CostEstimate(
        flops=2 * M * nf * out_dim,
        transcendentals=0,
        bytes_accessed=(x_bytes * grid_j * m_pad * nf_pad
                        + w_bytes * grid_i * nf_pad * out_pad
                        + x_bytes * m_pad * out_pad + 4 * out_pad))

    step_bytes = (x_bytes * 2 * tm * tk + w_bytes * 2 * tk * tn + 2 * 4 * tn
                  + x_bytes * 2 * tm * tn + 4 * tm * tn)
    vmem_limit = int(min(plan["budget"], max(2 * step_bytes, 8 * 1024 * 1024)))

    if grid_k == 1:
        y2d = pl.pallas_call(
            _flatten_head_kernel_single,
            out_shape=jax.ShapeDtypeStruct((m_pad, out_pad), x.dtype),
            grid_spec=pltpu.PrefetchScalarGridSpec(
                num_scalar_prefetch=0,
                grid=(grid_i, grid_j),
                in_specs=[
                    pl.BlockSpec((tm, nf_pad), lambda i, j: (i, 0)),   # x
                    pl.BlockSpec((nf_pad, tn), lambda i, j: (0, j)),   # weight
                    pl.BlockSpec((1, tn), lambda i, j: (0, j)),        # bias
                ],
                out_specs=pl.BlockSpec((tm, tn), lambda i, j: (i, j)),
            ),
            compiler_params=pltpu.CompilerParams(
                dimension_semantics=("parallel", "parallel"),
                vmem_limit_bytes=vmem_limit),
            cost_estimate=cost,
        )(x2d, w_t, b_p)
    else:
        y2d = pl.pallas_call(
            _flatten_head_kernel_acc,
            out_shape=jax.ShapeDtypeStruct((m_pad, out_pad), x.dtype),
            grid_spec=pltpu.PrefetchScalarGridSpec(
                num_scalar_prefetch=0,
                grid=(grid_i, grid_j, grid_k),
                in_specs=[
                    pl.BlockSpec((tm, tk), lambda i, j, k: (i, k)),    # x
                    pl.BlockSpec((tk, tn), lambda i, j, k: (k, j)),    # weight
                    pl.BlockSpec((1, tn), lambda i, j, k: (0, j)),     # bias
                ],
                out_specs=pl.BlockSpec((tm, tn), lambda i, j, k: (i, j)),
                scratch_shapes=[pltpu.VMEM((tm, tn), jnp.float32)],
            ),
            compiler_params=pltpu.CompilerParams(
                dimension_semantics=("parallel", "parallel", "arbitrary"),
                vmem_limit_bytes=vmem_limit),
            cost_estimate=cost,
        )(x2d, w_t, b_p)

    y2d = y2d[:M, :out_dim]
    # TODO(synk): nn.Dropout omitted (identity at eval / head_dropout=0 default).
    return y2d.reshape(*lead, out_dim)


def flatten_head(x, weight, bias, no_fc=False, *, weight_dtype=None):
    """Convenience wrapper matching FlattenHead.forward.  In a real model, call
    prepare_flatten_head() once at setup and reuse (w_t, b_p, plan)."""
    w_t, b_p, plan = prepare_flatten_head(weight, bias, weight_dtype=weight_dtype)
    return flatten_head_forward(x, w_t, b_p, plan, no_fc=no_fc)


if __name__ == "__main__":
    # Small shapes consistent with the module: x = (batch, n_vars, d_model, patch_num)
    batch, n_vars, d_model, patch_num = 2, 4, 16, 16
    nf = d_model * patch_num          # 256
    out_dim = 96                      # not a multiple of 128 -> exercises padding

    key = jax.random.PRNGKey(0)
    kx, kw, kb = jax.random.split(key, 3)
    x = jax.random.normal(kx, (batch, n_vars, d_model, patch_num), dtype=jnp.float32)
    weight = jax.random.normal(kw, (out_dim, nf), dtype=jnp.float32) * 0.05
    bias = jax.random.normal(kb, (out_dim,), dtype=jnp.float32) * 0.05

    # One-time parameter prep (hoisted out of the forward hot path).
    w_t, b_p, plan = prepare_flatten_head(weight, bias)
    out = jax.block_until_ready(flatten_head_forward(x, w_t, b_p, plan))

    # Reference check against plain JAX (same semantics as the PyTorch module).
    ref = jnp.einsum("bvf,of->bvo", x.reshape(batch, n_vars, nf), weight,
                     precision=lax.Precision.HIGHEST) + bias
    assert out.shape == (batch, n_vars, out_dim), out.shape
    assert jnp.allclose(out, ref, atol=2e-3, rtol=2e-3), \
        float(jnp.max(jnp.abs(out - ref)))

    # no_fc path: just the flatten.
    flat = jax.block_until_ready(
        flatten_head_forward(x, w_t, b_p, plan, no_fc=True))
    assert flat.shape == (batch, n_vars, nf)
    assert jnp.allclose(flat, x.reshape(batch, n_vars, nf))

    print("KERNEL_OK")
</pallas_src>

<mosaic_0001>
module attributes {stable_mosaic.version = 11 : i64} {
  func.func @_flatten_head_kernel_single(%arg0: i32, %arg1: i32, %arg2: memref<8x256xf32, #tpu.memory_space<vmem>>, %arg3: memref<256x128xf32, #tpu.memory_space<vmem>>, %arg4: memref<1x128xf32, #tpu.memory_space<vmem>>, %arg5: memref<8x128xf32, #tpu.memory_space<vmem>>) attributes {dimension_semantics = [#tpu.dimension_semantics<parallel>, #tpu.dimension_semantics<parallel>], iteration_bounds = array<i64: 1, 1>, scalar_prefetch = 0 : i64, scratch_operands = 0 : i64, tpu.core_type = #tpu.core_type<tc>, window_params = [{transform_indices = @transform_0, window_bounds = array<i64: 8, 256>}, {transform_indices = @transform_1, window_bounds = array<i64: 256, 128>}, {transform_indices = @transform_2, window_bounds = array<i64: 1, 128>}, {transform_indices = @transform_3, window_bounds = array<i64: 8, 128>}]} {
    %c0 = arith.constant 0 : index
    %c0_0 = arith.constant 0 : index
    %0 = vector.load %arg2[%c0, %c0_0] : memref<8x256xf32, #tpu.memory_space<vmem>>, vector<8x256xf32>
    %c0_1 = arith.constant 0 : index
    %c0_2 = arith.constant 0 : index
    %1 = vector.load %arg3[%c0_1, %c0_2] : memref<256x128xf32, #tpu.memory_space<vmem>>, vector<256x128xf32>
    %cst = arith.constant dense<0.000000e+00> : vector<8x128xf32>
    %2 = tpu.matmul %0, %1, %cst {dimension_numbers = #tpu.dot_dimension_numbers<[1], [0], [0], [1], [0, 0, 1, 1], [], []>} : vector<8x256xf32>, vector<256x128xf32>, vector<8x128xf32> -> vector<8x128xf32>
    %c0_3 = arith.constant 0 : index
    %c0_4 = arith.constant 0 : index
    %3 = vector.load %arg4[%c0_3, %c0_4] : memref<1x128xf32, #tpu.memory_space<vmem>>, vector<1x128xf32>
    %4 = vector.broadcast %3 : vector<1x128xf32> to vector<8x128xf32>
    %5 = arith.addf %2, %4 : vector<8x128xf32>
    %c0_5 = arith.constant 0 : index
    %c0_6 = arith.constant 0 : index
    %6 = vector.load %arg5[%c0_5, %c0_6] : memref<8x128xf32, #tpu.memory_space<vmem>>, vector<8x128xf32>
    tpu.vector_store %arg5[%c0_5, %c0_6], %5 {strides = array<i32>} : memref<8x128xf32, #tpu.memory_space<vmem>>, vector<8x128xf32>,
    return
  }
  func.func @transform_0(%arg0: i32, %arg1: i32) -> (i32, i32) {
    %c0_i32 = arith.constant 0 : i32
    %c0_i32_0 = arith.constant 0 : i32
    return %arg0, %c0_i32 : i32, i32
  }
  func.func @transform_1(%arg0: i32, %arg1: i32) -> (i32, i32) {
    %c0_i32 = arith.constant 0 : i32
    %c0_i32_0 = arith.constant 0 : i32
    return %c0_i32, %arg1 : i32, i32
  }
  func.func @transform_2(%arg0: i32, %arg1: i32) -> (i32, i32) {
    %c0_i32 = arith.constant 0 : i32
    %c0_i32_0 = arith.constant 0 : i32
    return %c0_i32, %arg1 : i32, i32
  }
  func.func @transform_3(%arg0: i32, %arg1: i32) -> (i32, i32) {
    %c0_i32 = arith.constant 0 : i32
    return %arg0, %arg1 : i32, i32
  }
}

</mosaic_0001>

<llo_original>
// kernel: tpu_custom_call.1
$region0: #{tpu_custom_call.1}
  #allocation0 [shape = 'u32[]', space=smem, size = 0x4, offset = 0x4, fixed_abs, tag = 'smem constant byte address 0x4 - core index']
  #allocation1 [shape = 'u32[144,128]{1,0:T(1,128)}', space=vmem, size = 0x12000, scoped, tag = 'internal scratch']
  %s0 = inlined_call_operand.hbm [shape: f32[8,256], index: 0, kind: input, shape index: {}]
  %s1 = inlined_call_operand.hbm [shape: f32[256,128], index: 1, kind: input, shape index: {}]
  %s2 = inlined_call_operand.vmem [shape: f32[1,128], index: 2, kind: input, shape index: {}]
  %s3 = inlined_call_operand.hbm [shape: f32[8,128], index: 3, kind: output, shape index: {}]
  %s4 = sld [smem:[#allocation0]]
  $region30: #{tpu_custom_call.1} parent=0
    _
  %s6 = ssub.s32 1, %s4
  %s7 = scalar_select 0, %s6, %s4
  $region1: #{tpu_custom_call.1} parent=0
    #allocation2 [shape = 'u8[8192]{0}', space=vmem, size = 0x2000, scoped, tag = 'input window, operand 0, single buffered']
    #allocation3 [shape = 's32[1]{0}', space=sflag, size = 0x4, scoped, tag = 'scoped memory for tpu_custom_call.1']
    #allocation4 [shape = 's32[1]{0}', space=sflag, size = 0x4, scoped, tag = 'scoped memory for tpu_custom_call.1']
    #allocation5 [shape = 'u8[131072]{0}', space=vmem, size = 0x20000, scoped, tag = 'input window, operand 1, single buffered']
    #allocation6 [shape = 's32[1]{0}', space=sflag, size = 0x4, scoped, tag = 'scoped memory for tpu_custom_call.1']
    #allocation7 [shape = 'u8[4096]{0}', space=vmem, size = 0x1000, scoped, tag = 'output window, operand 0, single buffered']
    %8 = vsyncpa [#allocation3], 0
    %9 = vsyncpa [#allocation6], 0
    %10 = vsyncpa [#allocation4], 0
    // Predicated region
    $region2: #{tpu_custom_call.1} parent=1 // pred_check
      _
    $region3: #{tpu_custom_call.1} parent=1 // pred_check_branch
      %12 = sbr.rel (0) target = $region5
    $region4: #{tpu_custom_call.1} parent=1 // pred_region
      %s14 = ssub.s32 256, 256
      %15 = vsyncadd [#allocation3], %s14
      %s17 = sshll.u32 [#allocation2], 4
      %s18 = int_to_ptr.vmem [resolvable:$true] %s17
      %20 = dma.hbm_to_vmem [thread:$0]  %s0, 256, %s18, [#allocation3]
    $region5: #{tpu_custom_call.1} parent=1 // pred_fallthru
      _
    // Predicated region
    $region6: #{tpu_custom_call.1} parent=1 // pred_check
      _
    $region7: #{tpu_custom_call.1} parent=1 // pred_check_branch
      %22 = sbr.rel (0) target = $region9
    $region8: #{tpu_custom_call.1} parent=1 // pred_region
      %s24 = ssub.s32 4096, 4096
      %25 = vsyncadd [#allocation6], %s24
      %s26 = sshll.u32 [#allocation5], 4
      %s27 = int_to_ptr.vmem [resolvable:$true] %s26
      %32 = dma.hbm_to_vmem [thread:$0]  %s1, 4096, %s27, [#allocation6], 128, 128, 8
    $region9: #{tpu_custom_call.1} parent=1 // pred_fallthru
      _
    // Predicated region
    $region10: #{tpu_custom_call.1} parent=1 // pred_check
      _
    $region11: #{tpu_custom_call.1} parent=1 // pred_check_branch
      %34 = sbr.rel (0) target = $region13
    $region12: #{tpu_custom_call.1} parent=1 // pred_region
      _
    $region13: #{tpu_custom_call.1} parent=1 // pred_fallthru
      _
    // Predicated region
    $region14: #{tpu_custom_call.1} parent=1 // pred_check
      _
    $region15: #{tpu_custom_call.1} parent=1 // pred_check_branch
      %36 = sbr.rel (0) target = $region17
    $region16: #{tpu_custom_call.1} parent=1 // pred_region
      %37 = dma.done [#allocation3], 256
    $region17: #{tpu_custom_call.1} parent=1 // pred_fallthru
      _
    // Predicated region
    $region18: #{tpu_custom_call.1} parent=1 // pred_check
      _
    $region19: #{tpu_custom_call.1} parent=1 // pred_check_branch
      %39 = sbr.rel (0) target = $region21
    $region20: #{tpu_custom_call.1} parent=1 // pred_region
      %40 = dma.done [#allocation6], 4096
    $region21: #{tpu_custom_call.1} parent=1 // pred_fallthru
      _
    %v41 = vld [vmem:[#allocation2] sm:$0xff]
    %v42 = vld [vmem:[#allocation2 + $0x8] sm:$0xff]
    %v43 = vld [vmem:[#allocation5] sm:$0xff]
    %v44 = vld [vmem:[#allocation5 + $0x8] sm:$0xff]
    %v45 = vld [vmem:[#allocation5 + $0x10] sm:$0xff]
    %v46 = vld [vmem:[#allocation5 + $0x18] sm:$0xff]
    %v47 = vld [vmem:[#allocation5 + $0x20] sm:$0xff]
    %v48 = vld [vmem:[#allocation5 + $0x28] sm:$0xff]
    %v49 = vld [vmem:[#allocation5 + $0x30] sm:$0xff]
    %v50 = vld [vmem:[#allocation5 + $0x38] sm:$0xff]
    %v51 = vld [vmem:[#allocation5 + $0x40] sm:$0xff]
    %v52 = vld [vmem:[#allocation5 + $0x48] sm:$0xff]
    %v53 = vld [vmem:[#allocation5 + $0x50] sm:$0xff]
    %v54 = vld [vmem:[#allocation5 + $0x58] sm:$0xff]
    %v55 = vld [vmem:[#allocation5 + $0x60] sm:$0xff]
    %v56 = vld [vmem:[#allocation5 + $0x68] sm:$0xff]
    %v57 = vld [vmem:[#allocation5 + $0x70] sm:$0xff]
    %v58 = vld [vmem:[#allocation5 + $0x78] sm:$0xff]
    %v59 = vld [vmem:[#allocation5 + $0x80] sm:$0xff]
    %v60 = vld [vmem:[#allocation5 + $0x88] sm:$0xff]
    %v61 = vld [vmem:[#allocation5 + $0x90] sm:$0xff]
    %v62 = vld [vmem:[#allocation5 + $0x98] sm:$0xff]
    %v63 = vld [vmem:[#allocation5 + $0xa0] sm:$0xff]
    %v64 = vld [vmem:[#allocation5 + $0xa8] sm:$0xff]
    %v65 = vld [vmem:[#allocation5 + $0xb0] sm:$0xff]
    %v66 = vld [vmem:[#allocation5 + $0xb8] sm:$0xff]
    %v67 = vld [vmem:[#allocation5 + $0xc0] sm:$0xff]
    %v68 = vld [vmem:[#allocation5 + $0xc8] sm:$0xff]
    %v69 = vld [vmem:[#allocation5 + $0xd0] sm:$0xff]
    %v70 = vld [vmem:[#allocation5 + $0xd8] sm:$0xff]
    %v71 = vld [vmem:[#allocation5 + $0xe0] sm:$0xff]
    %v72 = vld [vmem:[#allocation5 + $0xe8] sm:$0xff]
    %v73 = vld [vmem:[#allocation5 + $0xf0] sm:$0xff]
    %v74 = vld [vmem:[#allocation5 + $0xf8] sm:$0xff]
    %v75 = vld [vmem:[%s2] sm:$0x1]
    %v77 = vlaneseq
    %v78 = vshrl.u32 %v77, 7
    %v79 = vsub.s32 0, %v78
    %v80 = vrot.slane %v75, %v79
    %82 = vmatprep.subr.mxu0 0.0
    %83 = vmatpush1.msra.mxu0 %v43
    %84 = vmatprep.subr.mxu0 0.0
    %85 = vmatpush1.msra.mxu0 %v44
    %86 = vmatprep.subr.mxu0 0.0
    %87 = vmatpush1.msra.mxu0 %v45
    %88 = vmatprep.subr.mxu0 0.0
    %89 = vmatpush1.msra.mxu0 %v46
    %90 = vmatprep.subr.mxu0 0.0
    %91 = vmatpush1.msra.mxu0 %v47
    %92 = vmatprep.subr.mxu0 0.0
    %93 = vmatpush1.msra.mxu0 %v48
    %94 = vmatprep.subr.mxu0 0.0
    %95 = vmatpush1.msra.mxu0 %v49
    %96 = vmatprep.subr.mxu0 0.0
    %97 = vmatpush1.msra.mxu0 %v50
    %98 = vmatprep.subr.mxu0 0.0
    %99 = vmatpush1.msra.mxu0 %v51
    %100 = vmatprep.subr.mxu0 0.0
    %101 = vmatpush1.msra.mxu0 %v52
    %102 = vmatprep.subr.mxu0 0.0
    %103 = vmatpush1.msra.mxu0 %v53
    %104 = vmatprep.subr.mxu0 0.0
    %105 = vmatpush1.msra.mxu0 %v54
    %106 = vmatprep.subr.mxu0 0.0
    %107 = vmatpush1.msra.mxu0 %v55
    %108 = vmatprep.subr.mxu0 0.0
    %109 = vmatpush1.msra.mxu0 %v56
    %110 = vmatprep.subr.mxu0 0.0
    %111 = vmatpush1.msra.mxu0 %v57
    %112 = vmatprep.subr.mxu0 0.0
    %113 = vmatpush1.msra.mxu0 %v58
    %114 = vmatprep.subr.mxu0 0.0
    %115 = vmatpush1.msra.mxu0 %v59
    %116 = vmatprep.subr.mxu0 0.0
    %117 = vmatpush1.msra.mxu0 %v60
    %118 = vmatprep.subr.mxu0 0.0
    %119 = vmatpush1.msra.mxu0 %v61
    %120 = vmatprep.subr.mxu0 0.0
    %121 = vmatpush1.msra.mxu0 %v62
    %122 = vmatprep.subr.mxu0 0.0
    %123 = vmatpush1.msra.mxu0 %v63
    %124 = vmatprep.subr.mxu0 0.0
    %125 = vmatpush1.msra.mxu0 %v64
    %126 = vmatprep.subr.mxu0 0.0
    %127 = vmatpush1.msra.mxu0 %v65
    %128 = vmatprep.subr.mxu0 0.0
    %129 = vmatpush1.msra.mxu0 %v66
    %130 = vmatprep.subr.mxu0 0.0
    %131 = vmatpush1.msra.mxu0 %v67
    %132 = vmatprep.subr.mxu0 0.0
    %133 = vmatpush1.msra.mxu0 %v68
    %134 = vmatprep.subr.mxu0 0.0
    %135 = vmatpush1.msra.mxu0 %v69
    %136 = vmatprep.subr.mxu0 0.0
    %137 = vmatpush1.msra.mxu0 %v70
    %138 = vmatprep.subr.mxu0 0.0
    %139 = vmatpush1.msra.mxu0 %v71
    %140 = vmatprep.subr.mxu0 0.0
    %141 = vmatpush1.msra.mxu0 %v72
    %142 = vmatprep.subr.mxu0 0.0
    %143 = vmatpush1.msra.mxu0 %v73
    %144 = vmatprep.subr.mxu0 0.0
    %145 = vmatpush1.msra.mxu0 %v74
    %146 = vmatprep.mubr.f32.mxu0 %v42
    %147 = vmatmul.mubr.f32.gmra.mrb[0].mxu0 %v41
    %v148 = vpop.f32.mrb[0].mxu0
    %v149 = vadd.f32 %v80, %v148
    %v150 = vpop.f32.mrb[0].mxu0
    %151 = vdwg.mxu0
    %152 = vst [vmem:[#allocation7] sm:$0xff] %v149
    // Predicated region
    $region22: #{tpu_custom_call.1} parent=1 // pred_check
      _
    $region23: #{tpu_custom_call.1} parent=1 // pred_check_branch
      %154 = sbr.rel (0) target = $region25
    $region24: #{tpu_custom_call.1} parent=1 // pred_region
      %s156 = ssub.s32 128, 128
      %157 = vsyncadd [#allocation4], %s156
      %s159 = sshll.u32 [#allocation7], 4
      %s160 = int_to_ptr.vmem [resolvable:$true] %s159
      %162 = dma.vmem_to_hbm [thread:$0]  %s160, 128, %s3, [#allocation4]
    $region25: #{tpu_custom_call.1} parent=1 // pred_fallthru
      _
    // Predicated region
    $region26: #{tpu_custom_call.1} parent=1 // pred_check
      _
    $region27: #{tpu_custom_call.1} parent=1 // pred_check_branch
      %164 = sbr.rel (0) target = $region29
    $region28: #{tpu_custom_call.1} parent=1 // pred_region
      %165 = dma.done [#allocation4], 128
    $region29: #{tpu_custom_call.1} parent=1 // pred_fallthru
      _
    %166 = vsyncpa [#allocation3], 1
    %167 = vsyncpa [#allocation6], 1
    %168 = vsyncpa [#allocation4], 1

</llo_original>
